<compile_context>
chip_gen: v7x
topology: tpu7x:2x2x1
jax: 0.10.0
libtpu: 0.0.40
codegen_flags: <defaults>
</compile_context>

<pallas_src>
import jax
import jax.numpy as jnp
from jax.experimental import pallas as pl
from jax.experimental.pallas import tpu as pltpu


def _round_up(x, m):
    return ((x + m - 1) // m) * m


def _default_min_grid_steps():
    """>=2 grid steps on v7x so the 'parallel' axis can use both TensorCores."""
    try:
        kind = jax.devices()[0].device_kind.lower()
    except Exception:
        return 1
    return 2 if "v7" in kind else 1


def q_net_kernel(s_ref,
                 w_f_ref, b_f_ref,
                 w_h1_ref, b_h1_ref,
                 w_h2_ref, b_h2_ref,
                 q_ref):
    # feature = ReLU(s @ W_f + b_f)   (bf16 MXU operands, f32 accumulate) -> (TB, H)
    feat = jnp.dot(s_ref[...], w_f_ref[...],
                   preferred_element_type=jnp.float32)
    feat = jnp.maximum(feat + b_f_ref[...], 0.0)

    # fused value/advantage hidden layer: one packed matmul            -> (TB, 2H)
    h = jnp.dot(feat.astype(w_h1_ref.dtype), w_h1_ref[...],
                preferred_element_type=jnp.float32)
    h = jnp.maximum(h + b_h1_ref[...], 0.0)

    # fused output layer: v already folded into every advantage column -> q
    q = jnp.dot(h.astype(w_h2_ref.dtype), w_h2_ref[...],
                preferred_element_type=jnp.float32)
    q_ref[...] = (q + b_h2_ref[...]).astype(q_ref.dtype)


def pack_params(params, *, compute_dtype=jnp.bfloat16, lane_pad_out=True):
    """Fuse both heads into packed weights (done once, outside the kernel).

    Weights are cast to `compute_dtype` (bf16 by default, MXU-native); biases
    stay f32 since bias-add / ReLU happen on the f32 accumulator.
    `lane_pad_out=True` pads the fused head to 128 output lanes (lane-dense
    unmasked stores); only use for small/moderate batch sizes.
    """
    hidden = params["w_f"].shape[1]
    a_num = params["w_a2"].shape[1]

    # Packed hidden layer of both heads: columns [0:H) = value, [H:2H) = adv.
    w_h1 = jnp.concatenate([params["w_v1"], params["w_a1"]], axis=1)   # (H, 2H)
    b_h1 = jnp.concatenate([params["b_v1"], params["b_a1"]], axis=1)   # (1, 2H)

    # Fused output layer producing q directly:
    #   q[:, j] = hv @ w_v2 + ha @ w_a2[:, j] + (b_v2 + b_a2[j])
    w_h2 = jnp.concatenate([jnp.tile(params["w_v2"], (1, a_num)),      # (H, A)
                            params["w_a2"]], axis=0)                   # (2H, A)
    b_h2 = params["b_v2"] + params["b_a2"]                             # (1, A)

    a_out = a_num
    if lane_pad_out and a_num % 128 != 0:
        a_out = _round_up(a_num, 128)
        w_h2 = jnp.pad(w_h2, ((0, 0), (0, a_out - a_num)))
        b_h2 = jnp.pad(b_h2, ((0, 0), (0, a_out - a_num)))

    return dict(
        w_f=params["w_f"].astype(compute_dtype),
        b_f=params["b_f"].astype(jnp.float32),
        w_h1=w_h1.astype(compute_dtype),
        b_h1=b_h1.astype(jnp.float32),
        w_h2=w_h2.astype(compute_dtype),
        b_h2=b_h2.astype(jnp.float32),
        a_num=a_num, a_out=a_out,
    )


def q_net_forward(s, packed, *, tile_b=512, min_grid_steps=None):
    """Dueling Q-network forward pass via one pallas_call.

    s: (B, s_dim) float32; packed: output of pack_params.
    returns: (B, a_num) float32
    """
    B, s_dim = s.shape
    hidden = packed["w_f"].shape[1]
    a_num = packed["a_num"]
    a_out = packed["a_out"]

    if min_grid_steps is None:
        min_grid_steps = _default_min_grid_steps()

    # Adaptive batch tiling: minimize padding (<= 7 wasted rows per tile) and
    # honor the minimum grid-step count (v7x megacore). Each tile >= 8 rows.
    ntiles = max(pl.cdiv(B, tile_b), min_grid_steps)
    ntiles = max(1, min(ntiles, pl.cdiv(B, 8)))
    tb = _round_up(pl.cdiv(B, ntiles), 8)
    b_pad = ntiles * tb

    if b_pad != B:
        s = jnp.pad(s, ((0, b_pad - B), (0, 0)))
    s = s.astype(packed["w_f"].dtype)            # bf16 streamed operand

    in_specs = [
        pl.BlockSpec((tb, s_dim), lambda i: (i, 0)),              # s (streamed)
        pl.BlockSpec((s_dim, hidden), lambda i: (0, 0)),          # w_f (resident)
        pl.BlockSpec((1, hidden), lambda i: (0, 0)),              # b_f
        pl.BlockSpec((hidden, 2 * hidden), lambda i: (0, 0)),     # w_h1
        pl.BlockSpec((1, 2 * hidden), lambda i: (0, 0)),          # b_h1
        pl.BlockSpec((2 * hidden, a_out), lambda i: (0, 0)),      # w_h2 (fused)
        pl.BlockSpec((1, a_out), lambda i: (0, 0)),               # b_h2 (fused)
    ]
    out_specs = pl.BlockSpec((tb, a_out), lambda i: (i, 0))

    q = pl.pallas_call(
        q_net_kernel,
        out_shape=jax.ShapeDtypeStruct((b_pad, a_out), jnp.float32),
        grid=(ntiles,),
        in_specs=in_specs,
        out_specs=out_specs,
        compiler_params=pltpu.CompilerParams(
            dimension_semantics=("parallel",)),
    )(s, packed["w_f"], packed["b_f"],
      packed["w_h1"], packed["b_h1"],
      packed["w_h2"], packed["b_h2"])

    return q[:B, :a_num]


def init_params(key, s_dim, hidden, a_num):
    """Deterministic synthetic parameter init (PyTorch-like uniform ranges)."""
    ks = jax.random.split(key, 10)

    def lin(kw, kb, fan_in, fan_out):
        bound = 1.0 / jnp.sqrt(fan_in)
        w = jax.random.uniform(kw, (fan_in, fan_out), jnp.float32, -bound, bound)
        b = jax.random.uniform(kb, (1, fan_out), jnp.float32, -bound, bound)
        return w, b

    w_f, b_f = lin(ks[0], ks[1], s_dim, hidden)
    w_v1, b_v1 = lin(ks[2], ks[3], hidden, hidden)
    w_v2, b_v2 = lin(ks[4], ks[5], hidden, 1)
    w_a1, b_a1 = lin(ks[6], ks[7], hidden, hidden)
    w_a2, b_a2 = lin(ks[8], ks[9], hidden, a_num)

    return dict(w_f=w_f, b_f=b_f,
                w_v1=w_v1, b_v1=b_v1, w_v2=w_v2, b_v2=b_v2,
                w_a1=w_a1, b_a1=b_a1, w_a2=w_a2, b_a2=b_a2)


def q_net_reference(s, p):
    # Matches the PyTorch module: q = v + advantage (no mean subtraction).
    feat = jnp.maximum(s @ p["w_f"] + p["b_f"], 0.0)
    v = jnp.maximum(feat @ p["w_v1"] + p["b_v1"], 0.0) @ p["w_v2"] + p["b_v2"]
    adv = jnp.maximum(feat @ p["w_a1"] + p["b_a1"], 0.0) @ p["w_a2"] + p["b_a2"]
    return v + adv


if __name__ == "__main__":
    key = jax.random.PRNGKey(0)
    k_param, k_input = jax.random.split(key)

    batch, s_dim, hidden, a_num = 8, 16, 32, 4
    params = init_params(k_param, s_dim, hidden, a_num)
    packed = pack_params(params)
    s = jax.random.normal(k_input, (batch, s_dim), jnp.float32)

    q = q_net_forward(s, packed)
    q = jax.block_until_ready(q)

    q_ref = q_net_reference(s, params)
    assert q.shape == (batch, a_num)
    # bf16 operands with f32 accumulation -> looser tolerance vs f32 reference.
    assert jnp.allclose(q, q_ref, atol=5e-2, rtol=5e-2), "mismatch vs reference"

    print("KERNEL_OK")
</pallas_src>

<mosaic_0001>
module attributes {stable_mosaic.version = 11 : i64} {
  func.func @q_net_kernel(%arg0: i32, %arg1: memref<8x16xbf16, #tpu.memory_space<vmem>>, %arg2: memref<16x32xbf16, #tpu.memory_space<vmem>>, %arg3: memref<1x32xf32, #tpu.memory_space<vmem>>, %arg4: memref<32x64xbf16, #tpu.memory_space<vmem>>, %arg5: memref<1x64xf32, #tpu.memory_space<vmem>>, %arg6: memref<64x128xbf16, #tpu.memory_space<vmem>>, %arg7: memref<1x128xf32, #tpu.memory_space<vmem>>, %arg8: memref<8x128xf32, #tpu.memory_space<vmem>>) attributes {dimension_semantics = [#tpu.dimension_semantics<parallel>], iteration_bounds = array<i64: 1>, scalar_prefetch = 0 : i64, scratch_operands = 0 : i64, tpu.core_type = #tpu.core_type<tc>, window_params = [{transform_indices = @transform_0, window_bounds = array<i64: 8, 16>}, {pipeline_mode = #tpu.pipeline_mode<synchronous>, transform_indices = @transform_1, window_bounds = array<i64: 16, 32>}, {pipeline_mode = #tpu.pipeline_mode<synchronous>, transform_indices = @transform_2, window_bounds = array<i64: 1, 32>}, {pipeline_mode = #tpu.pipeline_mode<synchronous>, transform_indices = @transform_3, window_bounds = array<i64: 32, 64>}, {pipeline_mode = #tpu.pipeline_mode<synchronous>, transform_indices = @transform_4, window_bounds = array<i64: 1, 64>}, {pipeline_mode = #tpu.pipeline_mode<synchronous>, transform_indices = @transform_5, window_bounds = array<i64: 64, 128>}, {pipeline_mode = #tpu.pipeline_mode<synchronous>, transform_indices = @transform_6, window_bounds = array<i64: 1, 128>}, {transform_indices = @transform_7, window_bounds = array<i64: 8, 128>}]} {
    %c0 = arith.constant 0 : index
    %c0_0 = arith.constant 0 : index
    %0 = vector.load %arg1[%c0, %c0_0] : memref<8x16xbf16, #tpu.memory_space<vmem>>, vector<8x16xbf16>
    %c0_1 = arith.constant 0 : index
    %c0_2 = arith.constant 0 : index
    %1 = vector.load %arg2[%c0_1, %c0_2] : memref<16x32xbf16, #tpu.memory_space<vmem>>, vector<16x32xbf16>
    %cst = arith.constant dense<0.000000e+00> : vector<8x32xf32>
    %2 = tpu.matmul %0, %1, %cst {dimension_numbers = #tpu.dot_dimension_numbers<[1], [0], [0], [1], [0, 0, 1, 1], [], []>} : vector<8x16xbf16>, vector<16x32xbf16>, vector<8x32xf32> -> vector<8x32xf32>
    %c0_3 = arith.constant 0 : index
    %c0_4 = arith.constant 0 : index
    %3 = vector.load %arg3[%c0_3, %c0_4] : memref<1x32xf32, #tpu.memory_space<vmem>>, vector<1x32xf32>
    %4 = vector.broadcast %3 : vector<1x32xf32> to vector<8x32xf32>
    %5 = arith.addf %2, %4 : vector<8x32xf32>
    %cst_5 = arith.constant 0.000000e+00 : f32
    %6 = vector.broadcast %cst_5 : f32 to vector<8x32xf32>
    %7 = arith.maximumf %5, %6 : vector<8x32xf32>
    %8 = arith.truncf %7 : vector<8x32xf32> to vector<8x32xbf16>
    %c0_6 = arith.constant 0 : index
    %c0_7 = arith.constant 0 : index
    %9 = vector.load %arg4[%c0_6, %c0_7] : memref<32x64xbf16, #tpu.memory_space<vmem>>, vector<32x64xbf16>
    %cst_8 = arith.constant dense<0.000000e+00> : vector<8x64xf32>
    %10 = tpu.matmul %8, %9, %cst_8 {dimension_numbers = #tpu.dot_dimension_numbers<[1], [0], [0], [1], [0, 0, 1, 1], [], []>} : vector<8x32xbf16>, vector<32x64xbf16>, vector<8x64xf32> -> vector<8x64xf32>
    %c0_9 = arith.constant 0 : index
    %c0_10 = arith.constant 0 : index
    %11 = vector.load %arg5[%c0_9, %c0_10] : memref<1x64xf32, #tpu.memory_space<vmem>>, vector<1x64xf32>
    %12 = vector.broadcast %11 : vector<1x64xf32> to vector<8x64xf32>
    %13 = arith.addf %10, %12 : vector<8x64xf32>
    %cst_11 = arith.constant 0.000000e+00 : f32
    %14 = vector.broadcast %cst_11 : f32 to vector<8x64xf32>
    %15 = arith.maximumf %13, %14 : vector<8x64xf32>
    %16 = arith.truncf %15 : vector<8x64xf32> to vector<8x64xbf16>
    %c0_12 = arith.constant 0 : index
    %c0_13 = arith.constant 0 : index
    %17 = vector.load %arg6[%c0_12, %c0_13] : memref<64x128xbf16, #tpu.memory_space<vmem>>, vector<64x128xbf16>
    %cst_14 = arith.constant dense<0.000000e+00> : vector<8x128xf32>
    %18 = tpu.matmul %16, %17, %cst_14 {dimension_numbers = #tpu.dot_dimension_numbers<[1], [0], [0], [1], [0, 0, 1, 1], [], []>} : vector<8x64xbf16>, vector<64x128xbf16>, vector<8x128xf32> -> vector<8x128xf32>
    %c0_15 = arith.constant 0 : index
    %c0_16 = arith.constant 0 : index
    %19 = vector.load %arg7[%c0_15, %c0_16] : memref<1x128xf32, #tpu.memory_space<vmem>>, vector<1x128xf32>
    %20 = vector.broadcast %19 : vector<1x128xf32> to vector<8x128xf32>
    %21 = arith.addf %18, %20 : vector<8x128xf32>
    %c0_17 = arith.constant 0 : index
    %c0_18 = arith.constant 0 : index
    %22 = vector.load %arg8[%c0_17, %c0_18] : memref<8x128xf32, #tpu.memory_space<vmem>>, vector<8x128xf32>
    tpu.vector_store %arg8[%c0_17, %c0_18], %21 {strides = array<i32>} : memref<8x128xf32, #tpu.memory_space<vmem>>, vector<8x128xf32>,
    return
  }
  func.func @transform_0(%arg0: i32) -> (i32, i32) {
    %c0_i32 = arith.constant 0 : i32
    %c0_i32_0 = arith.constant 0 : i32
    return %arg0, %c0_i32 : i32, i32
  }
  func.func @transform_1(%arg0: i32) -> (i32, i32) {
    %c0_i32 = arith.constant 0 : i32
    %c0_i32_0 = arith.constant 0 : i32
    %c0_i32_1 = arith.constant 0 : i32
    return %c0_i32, %c0_i32_0 : i32, i32
  }
  func.func @transform_2(%arg0: i32) -> (i32, i32) {
    %c0_i32 = arith.constant 0 : i32
    %c0_i32_0 = arith.constant 0 : i32
    %c0_i32_1 = arith.constant 0 : i32
    return %c0_i32, %c0_i32_0 : i32, i32
  }
  func.func @transform_3(%arg0: i32) -> (i32, i32) {
    %c0_i32 = arith.constant 0 : i32
    %c0_i32_0 = arith.constant 0 : i32
    %c0_i32_1 = arith.constant 0 : i32
    return %c0_i32, %c0_i32_0 : i32, i32
  }
  func.func @transform_4(%arg0: i32) -> (i32, i32) {
    %c0_i32 = arith.constant 0 : i32
    %c0_i32_0 = arith.constant 0 : i32
    %c0_i32_1 = arith.constant 0 : i32
    return %c0_i32, %c0_i32_0 : i32, i32
  }
  func.func @transform_5(%arg0: i32) -> (i32, i32) {
    %c0_i32 = arith.constant 0 : i32
    %c0_i32_0 = arith.constant 0 : i32
    %c0_i32_1 = arith.constant 0 : i32
    return %c0_i32, %c0_i32_0 : i32, i32
  }
  func.func @transform_6(%arg0: i32) -> (i32, i32) {
    %c0_i32 = arith.constant 0 : i32
    %c0_i32_0 = arith.constant 0 : i32
    %c0_i32_1 = arith.constant 0 : i32
    return %c0_i32, %c0_i32_0 : i32, i32
  }
  func.func @transform_7(%arg0: i32) -> (i32, i32) {
    %c0_i32 = arith.constant 0 : i32
    %c0_i32_0 = arith.constant 0 : i32
    return %arg0, %c0_i32 : i32, i32
  }
}

</mosaic_0001>

<llo_original>
// kernel: tpu_custom_call.1
$region0: #{tpu_custom_call.1}
  #allocation0 [shape = 'u32[]', space=smem, size = 0x4, offset = 0x4, fixed_abs, tag = 'smem constant byte address 0x4 - core index']
  #allocation1 [shape = 'u32[144,128]{1,0:T(1,128)}', space=vmem, size = 0x12000, scoped, tag = 'internal scratch']
  %s0 = inlined_call_operand.hbm [shape: bf16[8,16], index: 0, kind: input, shape index: {}]
  %s1 = inlined_call_operand.hbm [shape: bf16[16,32], index: 1, kind: input, shape index: {}]
  %s2 = inlined_call_operand.vmem [shape: f32[1,32], index: 2, kind: input, shape index: {}]
  %s3 = inlined_call_operand.hbm [shape: bf16[32,64], index: 3, kind: input, shape index: {}]
  %s4 = inlined_call_operand.vmem [shape: f32[1,64], index: 4, kind: input, shape index: {}]
  %s5 = inlined_call_operand.hbm [shape: bf16[64,128], index: 5, kind: input, shape index: {}]
  %s6 = inlined_call_operand.vmem [shape: f32[1,128], index: 6, kind: input, shape index: {}]
  %s7 = inlined_call_operand.hbm [shape: f32[8,128], index: 7, kind: output, shape index: {}]
  %s8 = sld [smem:[#allocation0]]
  $region54: #{tpu_custom_call.1} parent=0
    _
  %s10 = ssub.s32 1, %s8
  %s11 = scalar_select 0, %s10, %s8
  $region1: #{tpu_custom_call.1} parent=0
    #allocation2 [shape = 'u8[2048]{0}', space=vmem, size = 0x800, scoped, tag = 'input window, operand 0, single buffered']
    #allocation3 [shape = 's32[1]{0}', space=sflag, size = 0x4, scoped, tag = 'scoped memory for tpu_custom_call.1']
    #allocation4 [shape = 's32[1]{0}', space=sflag, size = 0x4, scoped, tag = 'scoped memory for tpu_custom_call.1']
    #allocation5 [shape = 'u8[4096]{0}', space=vmem, size = 0x1000, scoped, tag = 'input window, operand 1, single buffered']
    #allocation6 [shape = 's32[1]{0}', space=sflag, size = 0x4, scoped, tag = 'scoped memory for tpu_custom_call.1']
    #allocation7 [shape = 'u8[8192]{0}', space=vmem, size = 0x2000, scoped, tag = 'input window, operand 3, single buffered']
    #allocation8 [shape = 'u8[16384]{0}', space=vmem, size = 0x4000, scoped, tag = 'input window, operand 5, single buffered']
    #allocation9 [shape = 's32[1]{0}', space=sflag, size = 0x4, scoped, tag = 'scoped memory for tpu_custom_call.1']
    #allocation10 [shape = 'u8[4096]{0}', space=vmem, size = 0x1000, scoped, tag = 'output window, operand 0, single buffered']
    %12 = vsyncpa [#allocation3], 0
    %13 = vsyncpa [#allocation6], 0
    %14 = vsyncpa [#allocation9], 0
    %15 = vsyncpa [#allocation4], 0
    // Predicated region
    $region2: #{tpu_custom_call.1} parent=1 // pred_check
      _
    $region3: #{tpu_custom_call.1} parent=1 // pred_check_branch
      %17 = sbr.rel (0) target = $region5
    $region4: #{tpu_custom_call.1} parent=1 // pred_region
      %s19 = ssub.s32 64, 64
      %20 = vsyncadd [#allocation3], %s19
      %s22 = sshll.u32 [#allocation2], 4
      %s23 = int_to_ptr.vmem [resolvable:$true] %s22
      %25 = dma.hbm_to_vmem [thread:$0]  %s0, 64, %s23, [#allocation3]
    $region5: #{tpu_custom_call.1} parent=1 // pred_fallthru
      _
    // Predicated region
    $region6: #{tpu_custom_call.1} parent=1 // pred_check
      _
    $region7: #{tpu_custom_call.1} parent=1 // pred_check_branch
      %27 = sbr.rel (0) target = $region9
    $region8: #{tpu_custom_call.1} parent=1 // pred_region
      %s29 = ssub.s32 128, 128
      %30 = vsyncadd [#allocation6], %s29
      %s31 = sshll.u32 [#allocation5], 4
      %s32 = int_to_ptr.vmem [resolvable:$true] %s31
      %37 = dma.hbm_to_vmem [thread:$0]  %s1, 128, %s32, [#allocation6], 64, 64, 4
    $region9: #{tpu_custom_call.1} parent=1 // pred_fallthru
      _
    // Predicated region
    $region10: #{tpu_custom_call.1} parent=1 // pred_check
      _
    $region11: #{tpu_custom_call.1} parent=1 // pred_check_branch
      %39 = sbr.rel (0) target = $region13
    $region12: #{tpu_custom_call.1} parent=1 // pred_region
      _
    $region13: #{tpu_custom_call.1} parent=1 // pred_fallthru
      _
    // Predicated region
    $region14: #{tpu_custom_call.1} parent=1 // pred_check
      _
    $region15: #{tpu_custom_call.1} parent=1 // pred_check_branch
      %41 = sbr.rel (0) target = $region17
    $region16: #{tpu_custom_call.1} parent=1 // pred_region
      %s43 = ssub.s32 256, 256
      %44 = vsyncadd [#allocation6], %s43
      %s45 = sshll.u32 [#allocation7], 4
      %s46 = int_to_ptr.vmem [resolvable:$true] %s45
      %51 = dma.hbm_to_vmem [thread:$0]  %s3, 256, %s46, [#allocation6], 64, 64, 4
    $region17: #{tpu_custom_call.1} parent=1 // pred_fallthru
      _
    // Predicated region
    $region18: #{tpu_custom_call.1} parent=1 // pred_check
      _
    $region19: #{tpu_custom_call.1} parent=1 // pred_check_branch
      %53 = sbr.rel (0) target = $region21
    $region20: #{tpu_custom_call.1} parent=1 // pred_region
      _
    $region21: #{tpu_custom_call.1} parent=1 // pred_fallthru
      _
    // Predicated region
    $region22: #{tpu_custom_call.1} parent=1 // pred_check
      _
    $region23: #{tpu_custom_call.1} parent=1 // pred_check_branch
      %55 = sbr.rel (0) target = $region25
    $region24: #{tpu_custom_call.1} parent=1 // pred_region
      %s57 = ssub.s32 512, 512
      %58 = vsyncadd [#allocation9], %s57
      %s59 = sshll.u32 [#allocation8], 4
      %s60 = int_to_ptr.vmem [resolvable:$true] %s59
      %65 = dma.hbm_to_vmem [thread:$0]  %s5, 512, %s60, [#allocation9], 64, 64, 4
    $region25: #{tpu_custom_call.1} parent=1 // pred_fallthru
      _
    // Predicated region
    $region26: #{tpu_custom_call.1} parent=1 // pred_check
      _
    $region27: #{tpu_custom_call.1} parent=1 // pred_check_branch
      %67 = sbr.rel (0) target = $region29
    $region28: #{tpu_custom_call.1} parent=1 // pred_region
      _
    $region29: #{tpu_custom_call.1} parent=1 // pred_fallthru
      _
    // Predicated region
    $region30: #{tpu_custom_call.1} parent=1 // pred_check
      _
    $region31: #{tpu_custom_call.1} parent=1 // pred_check_branch
      %69 = sbr.rel (0) target = $region33
    $region32: #{tpu_custom_call.1} parent=1 // pred_region
      %70 = dma.done [#allocation3], 64
    $region33: #{tpu_custom_call.1} parent=1 // pred_fallthru
      _
    // Predicated region
    $region34: #{tpu_custom_call.1} parent=1 // pred_check
      _
    $region35: #{tpu_custom_call.1} parent=1 // pred_check_branch
      %72 = sbr.rel (0) target = $region37
    $region36: #{tpu_custom_call.1} parent=1 // pred_region
      %73 = dma.done [#allocation6], 128
    $region37: #{tpu_custom_call.1} parent=1 // pred_fallthru
      _
    // Predicated region
    $region38: #{tpu_custom_call.1} parent=1 // pred_check
      _
    $region39: #{tpu_custom_call.1} parent=1 // pred_check_branch
      %75 = sbr.rel (0) target = $region41
    $region40: #{tpu_custom_call.1} parent=1 // pred_region
      %76 = dma.done [#allocation6], 256
    $region41: #{tpu_custom_call.1} parent=1 // pred_fallthru
      _
    // Predicated region
    $region42: #{tpu_custom_call.1} parent=1 // pred_check
      _
    $region43: #{tpu_custom_call.1} parent=1 // pred_check_branch
      %78 = sbr.rel (0) target = $region45
    $region44: #{tpu_custom_call.1} parent=1 // pred_region
      %79 = dma.done [#allocation9], 512
    $region45: #{tpu_custom_call.1} parent=1 // pred_fallthru
      _
    %v81 = vld [vmem:[#allocation2] sm:$0xf]
    %v82 = vld [vmem:[#allocation5] sm:$0xf]
    %v83 = vld [vmem:[#allocation5 + $0x4] sm:$0xf]
    %v84 = vld [vmem:[%s2] sm:$0x1]
    %v86 = vlaneseq
    %v87 = vshrl.u32 %v86, 7
    %v88 = vsub.s32 0, %v87
    %v89 = vrot.slane %v84, %v88
    %v93 = vunpack.c.l.b16 %v82
    %v94 = vunpack.c.l.b16 %v83
    %v95 = vpack.c.b16 %v94, %v93
    %vm97 = vcmask 130048
    %v99 = vsel %vm97, %v81, 0
    %101 = vmatprep.subr.bf16.mxu0 0
    %102 = vmatpush1.bf16.msra.mxu0 %v95
    %103 = vmatprep.subr.bf16.mxu0 0
    %104 = vmatpush1.bf16.msra.mxu0 0
    %105 = vmatprep.subr.bf16.mxu0 0
    %106 = vmatpush1.bf16.msra.mxu0 0
    %107 = vmatprep.subr.bf16.mxu0 0
    %108 = vmatpush1.bf16.msra.mxu0 0
    %109 = vmatprep.subr.bf16.mxu0 0
    %110 = vmatpush1.bf16.msra.mxu0 0
    %111 = vmatprep.subr.bf16.mxu0 0
    %112 = vmatpush1.bf16.msra.mxu0 0
    %113 = vmatprep.subr.bf16.mxu0 0
    %114 = vmatpush1.bf16.msra.mxu0 0
    %115 = vmatprep.subr.bf16.mxu0 0
    %116 = vmatpush1.bf16.msra.mxu0 0
    %117 = vmatprep.subr.bf16.mxu0 0
    %118 = vmatpush1.bf16.msra.mxu0 0
    %119 = vmatprep.subr.bf16.mxu0 0
    %120 = vmatpush1.bf16.msra.mxu0 0
    %121 = vmatprep.subr.bf16.mxu0 0
    %122 = vmatpush1.bf16.msra.mxu0 0
    %123 = vmatprep.subr.bf16.mxu0 0
    %124 = vmatpush1.bf16.msra.mxu0 0
    %125 = vmatprep.subr.bf16.mxu0 0
    %126 = vmatpush1.bf16.msra.mxu0 0
    %127 = vmatprep.subr.bf16.mxu0 0
    %128 = vmatpush1.bf16.msra.mxu0 0
    %129 = vmatprep.subr.bf16.mxu0 0
    %130 = vmatpush1.bf16.msra.mxu0 0
    %131 = vmatprep.subr.bf16.mxu0 0
    %132 = vmatpush1.bf16.msra.mxu0 0
    %133 = vmatprep.mubr.bf16.mxu0 0
    %134 = vmatmul.mubr.bf16.gmra.mrb[0].mxu0 %v99
    %v135 = vpop.f32.mrb[0].mxu0
    %v136 = vadd.f32 %v89, %v135
    %v137 = vpop.f32.mrb[0].mxu0
    %v138 = vpop.f32.mrb[0].mxu0
    %v139 = vpop.f32.mrb[0].mxu0
    %140 = vdwg.mxu0
    %v141 = vmax.f32 %v136, 0.0
    %v142 = vpack.c.bf16 %v141, %v141
    %v143 = vld [vmem:[#allocation7] sm:$0xf]
    %v144 = vld [vmem:[#allocation7 + $0x4] sm:$0xf]
    %v145 = vld [vmem:[#allocation7 + $0x8] sm:$0xf]
    %v146 = vld [vmem:[#allocation7 + $0xc] sm:$0xf]
    %v147 = vld [vmem:[%s4] sm:$0x1]
    %v149 = vlaneseq
    %v150 = vshrl.u32 %v149, 7
    %v151 = vsub.s32 0, %v150
    %v152 = vrot.slane %v147, %v151
    %v158 = vunpack.c.l.b16 %v143
    %v159 = vunpack.c.l.b16 %v144
    %v160 = vunpack.c.l.b16 %v145
    %v161 = vunpack.c.l.b16 %v146
    %v162 = vpack.c.b16 %v159, %v158
    %v163 = vpack.c.b16 %v161, %v160
    %vm166 = vcmask 261120
    %v168 = vsel %vm166, %v142, 0
    %170 = vmatprep.subr.bf16.mxu0 0
    %171 = vmatpush1.bf16.msra.mxu0 %v162
    %172 = vmatprep.subr.bf16.mxu0 0
    %173 = vmatpush1.bf16.msra.mxu0 %v163
    %174 = vmatprep.subr.bf16.mxu0 0
    %175 = vmatpush1.bf16.msra.mxu0 0
    %176 = vmatprep.subr.bf16.mxu0 0
    %177 = vmatpush1.bf16.msra.mxu0 0
    %178 = vmatprep.subr.bf16.mxu0 0
    %179 = vmatpush1.bf16.msra.mxu0 0
    %180 = vmatprep.subr.bf16.mxu0 0
    %181 = vmatpush1.bf16.msra.mxu0 0
    %182 = vmatprep.subr.bf16.mxu0 0
    %183 = vmatpush1.bf16.msra.mxu0 0
    %184 = vmatprep.subr.bf16.mxu0 0
    %185 = vmatpush1.bf16.msra.mxu0 0
    %186 = vmatprep.subr.bf16.mxu0 0
    %187 = vmatpush1.bf16.msra.mxu0 0
    %188 = vmatprep.subr.bf16.mxu0 0
    %189 = vmatpush1.bf16.msra.mxu0 0
    %190 = vmatprep.subr.bf16.mxu0 0
    %191 = vmatpush1.bf16.msra.mxu0 0
    %192 = vmatprep.subr.bf16.mxu0 0
    %193 = vmatpush1.bf16.msra.mxu0 0
    %194 = vmatprep.subr.bf16.mxu0 0
    %195 = vmatpush1.bf16.msra.mxu0 0
    %196 = vmatprep.subr.bf16.mxu0 0
    %197 = vmatpush1.bf16.msra.mxu0 0
    %198 = vmatprep.subr.bf16.mxu0 0
    %199 = vmatpush1.bf16.msra.mxu0 0
    %200 = vmatprep.subr.bf16.mxu0 0
    %201 = vmatpush1.bf16.msra.mxu0 0
    %202 = vmatprep.mubr.bf16.mxu0 0
    %203 = vmatmul.mubr.bf16.gmra.mrb[0].mxu0 %v168
    %v204 = vpop.f32.mrb[0].mxu0
    %v205 = vadd.f32 %v152, %v204
    %v206 = vpop.f32.mrb[0].mxu0
    %v207 = vpop.f32.mrb[0].mxu0
    %v208 = vpop.f32.mrb[0].mxu0
    %209 = vdwg.mxu0
    %v210 = vmax.f32 %v205, 0.0
    %v211 = vpack.c.bf16 %v210, %v210
    %v212 = vld [vmem:[#allocation8] sm:$0xf]
    %v213 = vld [vmem:[#allocation8 + $0x4] sm:$0xf]
    %v214 = vld [vmem:[#allocation8 + $0x8] sm:$0xf]
    %v215 = vld [vmem:[#allocation8 + $0xc] sm:$0xf]
    %v216 = vld [vmem:[#allocation8 + $0x10] sm:$0xf]
    %v217 = vld [vmem:[#allocation8 + $0x14] sm:$0xf]
    %v218 = vld [vmem:[#allocation8 + $0x18] sm:$0xf]
    %v219 = vld [vmem:[#allocation8 + $0x1c] sm:$0xf]
    %v220 = vld [vmem:[%s6] sm:$0x1]
    %v222 = vlaneseq
    %v223 = vshrl.u32 %v222, 7
    %v224 = vsub.s32 0, %v223
    %v225 = vrot.slane %v220, %v224
    %v235 = vunpack.c.l.b16 %v212
    %v236 = vunpack.c.l.b16 %v213
    %v237 = vunpack.c.l.b16 %v214
    %v238 = vunpack.c.l.b16 %v215
    %v239 = vunpack.c.l.b16 %v216
    %v240 = vunpack.c.l.b16 %v217
    %v241 = vunpack.c.l.b16 %v218
    %v242 = vunpack.c.l.b16 %v219
    %v243 = vpack.c.b16 %v236, %v235
    %v244 = vpack.c.b16 %v238, %v237
    %v245 = vpack.c.b16 %v240, %v239
    %v246 = vpack.c.b16 %v242, %v241
    %vm251 = vcmask 523264
    %v253 = vsel %vm251, %v211, 0
    %255 = vmatprep.subr.bf16.mxu0 0
    %256 = vmatpush1.bf16.msra.mxu0 %v243
    %257 = vmatprep.subr.bf16.mxu0 0
    %258 = vmatpush1.bf16.msra.mxu0 %v244
    %259 = vmatprep.subr.bf16.mxu0 0
    %260 = vmatpush1.bf16.msra.mxu0 %v245
    %261 = vmatprep.subr.bf16.mxu0 0
    %262 = vmatpush1.bf16.msra.mxu0 %v246
    %263 = vmatprep.subr.bf16.mxu0 0
    %264 = vmatpush1.bf16.msra.mxu0 0
    %265 = vmatprep.subr.bf16.mxu0 0
    %266 = vmatpush1.bf16.msra.mxu0 0
    %267 = vmatprep.subr.bf16.mxu0 0
    %268 = vmatpush1.bf16.msra.mxu0 0
    %269 = vmatprep.subr.bf16.mxu0 0
    %270 = vmatpush1.bf16.msra.mxu0 0
    %271 = vmatprep.subr.bf16.mxu0 0
    %272 = vmatpush1.bf16.msra.mxu0 0
    %273 = vmatprep.subr.bf16.mxu0 0
    %274 = vmatpush1.bf16.msra.mxu0 0
    %275 = vmatprep.subr.bf16.mxu0 0
    %276 = vmatpush1.bf16.msra.mxu0 0
    %277 = vmatprep.subr.bf16.mxu0 0
    %278 = vmatpush1.bf16.msra.mxu0 0
    %279 = vmatprep.subr.bf16.mxu0 0
    %280 = vmatpush1.bf16.msra.mxu0 0
    %281 = vmatprep.subr.bf16.mxu0 0
    %282 = vmatpush1.bf16.msra.mxu0 0
    %283 = vmatprep.subr.bf16.mxu0 0
    %284 = vmatpush1.bf16.msra.mxu0 0
    %285 = vmatprep.subr.bf16.mxu0 0
    %286 = vmatpush1.bf16.msra.mxu0 0
    %287 = vmatprep.mubr.bf16.mxu0 0
    %288 = vmatmul.mubr.bf16.gmra.mrb[0].mxu0 %v253
    %v289 = vpop.f32.mrb[0].mxu0
    %v290 = vadd.f32 %v225, %v289
    %v291 = vpop.f32.mrb[0].mxu0
    %v292 = vpop.f32.mrb[0].mxu0
    %v293 = vpop.f32.mrb[0].mxu0
    %294 = vdwg.mxu0
    %295 = vst [vmem:[#allocation10] sm:$0xff] %v290
    // Predicated region
    $region46: #{tpu_custom_call.1} parent=1 // pred_check
      _
    $region47: #{tpu_custom_call.1} parent=1 // pred_check_branch
      %297 = sbr.rel (0) target = $region49
    $region48: #{tpu_custom_call.1} parent=1 // pred_region
      %s299 = ssub.s32 128, 128
      %300 = vsyncadd [#allocation4], %s299
      %s302 = sshll.u32 [#allocation10], 4
      %s303 = int_to_ptr.vmem [resolvable:$true] %s302
      %305 = dma.vmem_to_hbm [thread:$0]  %s303, 128, %s7, [#allocation4]
    $region49: #{tpu_custom_call.1} parent=1 // pred_fallthru
      _
    // Predicated region
    $region50: #{tpu_custom_call.1} parent=1 // pred_check
      _
    $region51: #{tpu_custom_call.1} parent=1 // pred_check_branch
      %307 = sbr.rel (0) target = $region53
    $region52: #{tpu_custom_call.1} parent=1 // pred_region
      %308 = dma.done [#allocation4], 128
    $region53: #{tpu_custom_call.1} parent=1 // pred_fallthru
      _
    %309 = vsyncpa [#allocation3], 1
    %310 = vsyncpa [#allocation6], 1
    %311 = vsyncpa [#allocation9], 1
    %312 = vsyncpa [#allocation4], 1

</llo_original>
